<compile_context>
chip_gen: v7x
topology: tpu7x:2x2x1
jax: 0.10.0
libtpu: 0.0.40
codegen_flags: <defaults>
</compile_context>

<pallas_src>
import jax
import jax.numpy as jnp
from jax.experimental import pallas as pl
from jax.experimental.pallas import tpu as pltpu

HUBER_EPS = 0.002
_INV_2EPS = 1.0 / (2.0 * HUBER_EPS)      # hoisted: no per-element divide

_NUM_CORES = 2                  # v7x has 2 TCs; extra grid point is a no-op on v5e/v6e
_SUBLANE = 8
_PREDS_BUF_BUDGET = 8 << 20     # ~8 MiB per preds buffer (review: 8-16 MiB on v7x)
_VMEM_LIMIT = 40 << 20          # < v7x 64 MiB physical, > v5e 16 MiB scoped default


def _make_kernel(quantiles, n):
    """Build a kernel specialized on the static quantile values and N."""
    num_q = len(quantiles)

    def kernel(preds_ref, target_ref, out_ref, acc_ref):
        t = pl.program_id(1)            # tile index within this core (arbitrary axis)
        nt = pl.num_programs(1)

        @pl.when(t == 0)
        def _():
            acc_ref[...] = jnp.zeros_like(acc_ref)

        eps = jnp.float32(HUBER_EPS)
        half_eps = jnp.float32(0.5 * HUBER_EPS)
        inv_2eps = jnp.float32(_INV_2EPS)

        # Lane-dense slab loads; cast in-kernel (handles bf16 inputs without an
        # f32 HBM copy).
        # TODO(synk): optional bf16 elementwise path on v6e/v7x (validate
        # numerics: |error| ~ 1e-2 vs eps = 2e-3 is marginal in bf16).
        preds = preds_ref[...].astype(jnp.float32)      # (TB, Q*N)
        tgt = target_ref[...].astype(jnp.float32)       # (TB, N)

        step_sum = None
        for j in range(num_q):                          # Q small & static: unroll
            qv = jnp.float32(quantiles[j])              # baked compile-time consts
            qm1 = jnp.float32(quantiles[j] - 1.0)
            error = tgt - preds[:, j * n:(j + 1) * n]   # static lane-aligned slice
            error_abs = jnp.abs(error)
            h = jnp.where(error_abs > eps,
                          error_abs - half_eps,
                          error * error * inv_2eps)
            he = h * error                              # factored product
            term = jnp.where(error > 0.0, qv, qm1) * he
            step_sum = term if step_sum is None else step_sum + term

        acc_ref[...] += step_sum                        # pure VPU add per step

        @pl.when(t == nt - 1)
        def _():
            # one cross-lane/sublane reduce per core, only in the epilogue;
            # broadcast the per-core partial into its lane-dense (8,128) block.
            partial = jnp.sum(acc_ref[...])
            out_ref[...] = jnp.full(out_ref.shape, partial, dtype=jnp.float32)

    return kernel


def _round_up(x, m):
    return ((x + m - 1) // m) * m


def _choose_block_b(B, QN, itemsize, budget_bytes=_PREDS_BUF_BUDGET):
    """Batch-tile rows: largest sublane-aligned count whose lane-dense
    (rows, Q*N) preds buffer stays within ~budget_bytes, but never more rows
    than one core's share of the batch."""
    row_bytes = max(1, QN * itemsize)
    max_rows = max(_SUBLANE, (budget_bytes // row_bytes) // _SUBLANE * _SUBLANE)
    per_core = _round_up(pl.cdiv(B, _NUM_CORES), _SUBLANE)
    return min(max_rows, per_core)


def huber_norm_loss(preds, target, quantiles, *, block_b=None):
    """preds: [B, Q, N], target: [B, N], quantiles: static Python floats [Q].
    Returns the scalar f32 quantile-Huber loss (mean over Q*B*N elements)."""
    B, Q, N = preds.shape
    assert target.shape == (B, N), (target.shape, (B, N))
    quantiles = tuple(float(q) for q in quantiles)      # compile-time constants
    assert len(quantiles) == Q, "len(quantiles) must equal preds.shape[1]"
    QN = Q * N

    # Lane-dense layout: contiguous reshape, zero HBM cost.
    preds2d = preds.reshape(B, QN)

    if block_b is None:
        block_b = _choose_block_b(B, QN, preds.dtype.itemsize)
    assert block_b % _SUBLANE == 0, block_b

    # Zero-pad the batch so both cores get the same whole number of tiles.
    # Padded rows have preds == target == 0 -> error == 0 -> exactly-zero
    # terms, so dividing by the true Q*B*N keeps the mean exact.
    tiles_per_core = pl.cdiv(pl.cdiv(B, _NUM_CORES), block_b)
    b_pad = _NUM_CORES * tiles_per_core * block_b
    if b_pad != B:
        preds2d = jnp.pad(preds2d, ((0, b_pad - B), (0, 0)))
        target = jnp.pad(target, ((0, b_pad - B), (0, 0)))

    kernel = _make_kernel(quantiles, N)

    partials = pl.pallas_call(
        kernel,
        # one lane-dense (8,128) partial-sum block per core
        out_shape=jax.ShapeDtypeStruct((_NUM_CORES, _SUBLANE, 128), jnp.float32),
        grid_spec=pltpu.PrefetchScalarGridSpec(
            num_scalar_prefetch=0,
            grid=(_NUM_CORES, tiles_per_core),
            in_specs=[
                # lane-dense preds slab for this core's batch tile
                pl.BlockSpec((block_b, QN),
                             lambda c, t: (c * tiles_per_core + t, 0)),
                # matching target slab
                pl.BlockSpec((block_b, N),
                             lambda c, t: (c * tiles_per_core + t, 0)),
            ],
            out_specs=pl.BlockSpec((1, _SUBLANE, 128), lambda c, t: (c, 0, 0)),
            scratch_shapes=[pltpu.VMEM((block_b, N), jnp.float32)],
        ),
        compiler_params=pltpu.CompilerParams(
            # leading axis: megacore split (v7x); trailing axis carries the
            # per-core accumulator -> must stay sequential
            dimension_semantics=("parallel", "arbitrary"),
            vmem_limit_bytes=_VMEM_LIMIT,
        ),
    )(preds2d, target)

    denom = jnp.float32(Q) * jnp.float32(B) * jnp.float32(N)
    return jnp.sum(partials[:, 0, 0]) / denom


def huber_norm_loss_ref(preds, target, quantiles):
    """Pure-JAX reference mirroring the PyTorch forward."""
    eps = HUBER_EPS
    terms = []
    for i, q in enumerate(quantiles):
        error = target - preds[:, i]
        error_abs = jnp.abs(error)
        h = jnp.where(error_abs > eps, error_abs - eps / 2, error**2 / (2 * eps))
        terms.append(jnp.where(error > 0, q * h * error, (q - 1) * h * error))
    return jnp.mean(jnp.stack(terms))


if __name__ == "__main__":
    key = jax.random.PRNGKey(0)
    k1, k2, k3, k4 = jax.random.split(key, 4)

    B, Q, N = 32, 3, 128
    quantiles = [0.1, 0.5, 0.9]

    preds = jax.random.normal(k1, (B, Q, N), dtype=jnp.float32) * 0.01
    target = jax.random.normal(k2, (B, N), dtype=jnp.float32) * 0.01
    ref = jax.block_until_ready(huber_norm_loss_ref(preds, target, quantiles))

    # multi-tile-per-core grid (exercises the carried per-core accumulator)
    loss_tiled = jax.block_until_ready(
        huber_norm_loss(preds, target, quantiles, block_b=8))
    assert jnp.allclose(loss_tiled, ref, rtol=1e-5, atol=1e-7), (loss_tiled, ref)

    # auto tile selection (one tile per core at this shape)
    loss_auto = jax.block_until_ready(huber_norm_loss(preds, target, quantiles))
    assert jnp.allclose(loss_auto, ref, rtol=1e-5, atol=1e-7), (loss_auto, ref)

    # awkward batch size -> exercises the zero-padding path (exact result)
    B2 = 19
    preds2 = jax.random.normal(k3, (B2, Q, N), dtype=jnp.float32) * 0.01
    target2 = jax.random.normal(k4, (B2, N), dtype=jnp.float32) * 0.01
    ref2 = jax.block_until_ready(huber_norm_loss_ref(preds2, target2, quantiles))
    loss_pad = jax.block_until_ready(huber_norm_loss(preds2, target2, quantiles))
    assert jnp.allclose(loss_pad, ref2, rtol=1e-5, atol=1e-7), (loss_pad, ref2)

    print("KERNEL_OK")
</pallas_src>

<mosaic_0001>
module attributes {stable_mosaic.version = 11 : i64} {
  func.func @kernel(%arg0: i32, %arg1: i32, %arg2: memref<8x384xf32, #tpu.memory_space<vmem>>, %arg3: memref<8x128xf32, #tpu.memory_space<vmem>>, %arg4: memref<1x8x128xf32, #tpu.memory_space<vmem>>, %arg5: memref<8x128xf32, #tpu.memory_space<vmem>>) attributes {dimension_semantics = [#tpu.dimension_semantics<parallel>, #tpu.dimension_semantics<arbitrary>], iteration_bounds = array<i64: 2, 2>, scalar_prefetch = 0 : i64, scratch_operands = 1 : i64, tpu.core_type = #tpu.core_type<tc>, window_params = [{transform_indices = @transform_0, window_bounds = array<i64: 8, 384>}, {transform_indices = @transform_1, window_bounds = array<i64: 8, 128>}, {transform_indices = @transform_2, window_bounds = array<i64: 1, 8, 128>}]} {
    %c0_i32 = arith.constant 0 : i32
    %0 = arith.cmpi eq, %arg1, %c0_i32 : i32
    %1 = arith.extui %0 : i1 to i32
    %c0_i32_0 = arith.constant 0 : i32
    %2 = arith.cmpi ne, %1, %c0_i32_0 : i32
    scf.if %2 {
      %cst_26 = arith.constant 0.000000e+00 : f32
      %67 = vector.broadcast %cst_26 : f32 to vector<8x128xf32>
      %c0_27 = arith.constant 0 : index
      %c0_28 = arith.constant 0 : index
      %68 = vector.load %arg5[%c0_27, %c0_28] : memref<8x128xf32, #tpu.memory_space<vmem>>, vector<8x128xf32>
      tpu.vector_store %arg5[%c0_27, %c0_28], %67 {strides = array<i32>} : memref<8x128xf32, #tpu.memory_space<vmem>>, vector<8x128xf32>,
    } else {
    }
    %c0 = arith.constant 0 : index
    %c0_1 = arith.constant 0 : index
    %3 = vector.load %arg2[%c0, %c0_1] : memref<8x384xf32, #tpu.memory_space<vmem>>, vector<8x384xf32>
    %c0_2 = arith.constant 0 : index
    %c0_3 = arith.constant 0 : index
    %4 = vector.load %arg3[%c0_2, %c0_3] : memref<8x128xf32, #tpu.memory_space<vmem>>, vector<8x128xf32>
    %5 = vector.extract_strided_slice %3 {offsets = [0, 0], sizes = [8, 128], strides = [1, 1]} : vector<8x384xf32> to vector<8x128xf32>
    %6 = arith.subf %4, %5 : vector<8x128xf32>
    %7 = math.absf %6 : vector<8x128xf32>
    %cst = arith.constant 2.000000e-03 : f32
    %8 = vector.broadcast %cst : f32 to vector<8x128xf32>
    %9 = arith.cmpf ogt, %7, %8 : vector<8x128xf32>
    %cst_4 = arith.constant 1.000000e-03 : f32
    %10 = vector.broadcast %cst_4 : f32 to vector<8x128xf32>
    %11 = arith.subf %7, %10 : vector<8x128xf32>
    %12 = arith.mulf %6, %6 : vector<8x128xf32>
    %cst_5 = arith.constant 2.500000e+02 : f32
    %13 = vector.broadcast %cst_5 : f32 to vector<8x128xf32>
    %14 = arith.mulf %12, %13 : vector<8x128xf32>
    %15 = arith.select %9, %11, %14 : vector<8x128xi1>, vector<8x128xf32>
    %16 = arith.mulf %15, %6 : vector<8x128xf32>
    %cst_6 = arith.constant 0.000000e+00 : f32
    %17 = vector.broadcast %cst_6 : f32 to vector<8x128xf32>
    %18 = arith.cmpf ogt, %6, %17 : vector<8x128xf32>
    %cst_7 = arith.constant 1.000000e-01 : f32
    %cst_8 = arith.constant -0.899999976 : f32
    %19 = vector.broadcast %cst_7 : f32 to vector<8x128xf32>
    %20 = vector.broadcast %cst_8 : f32 to vector<8x128xf32>
    %21 = arith.select %18, %19, %20 : vector<8x128xi1>, vector<8x128xf32>
    %22 = arith.mulf %21, %16 : vector<8x128xf32>
    %23 = vector.extract_strided_slice %3 {offsets = [0, 128], sizes = [8, 128], strides = [1, 1]} : vector<8x384xf32> to vector<8x128xf32>
    %24 = arith.subf %4, %23 : vector<8x128xf32>
    %25 = math.absf %24 : vector<8x128xf32>
    %cst_9 = arith.constant 2.000000e-03 : f32
    %26 = vector.broadcast %cst_9 : f32 to vector<8x128xf32>
    %27 = arith.cmpf ogt, %25, %26 : vector<8x128xf32>
    %cst_10 = arith.constant 1.000000e-03 : f32
    %28 = vector.broadcast %cst_10 : f32 to vector<8x128xf32>
    %29 = arith.subf %25, %28 : vector<8x128xf32>
    %30 = arith.mulf %24, %24 : vector<8x128xf32>
    %cst_11 = arith.constant 2.500000e+02 : f32
    %31 = vector.broadcast %cst_11 : f32 to vector<8x128xf32>
    %32 = arith.mulf %30, %31 : vector<8x128xf32>
    %33 = arith.select %27, %29, %32 : vector<8x128xi1>, vector<8x128xf32>
    %34 = arith.mulf %33, %24 : vector<8x128xf32>
    %cst_12 = arith.constant 0.000000e+00 : f32
    %35 = vector.broadcast %cst_12 : f32 to vector<8x128xf32>
    %36 = arith.cmpf ogt, %24, %35 : vector<8x128xf32>
    %cst_13 = arith.constant 5.000000e-01 : f32
    %cst_14 = arith.constant -5.000000e-01 : f32
    %37 = vector.broadcast %cst_13 : f32 to vector<8x128xf32>
    %38 = vector.broadcast %cst_14 : f32 to vector<8x128xf32>
    %39 = arith.select %36, %37, %38 : vector<8x128xi1>, vector<8x128xf32>
    %40 = arith.mulf %39, %34 : vector<8x128xf32>
    %41 = arith.addf %22, %40 : vector<8x128xf32>
    %42 = vector.extract_strided_slice %3 {offsets = [0, 256], sizes = [8, 128], strides = [1, 1]} : vector<8x384xf32> to vector<8x128xf32>
    %43 = arith.subf %4, %42 : vector<8x128xf32>
    %44 = math.absf %43 : vector<8x128xf32>
    %cst_15 = arith.constant 2.000000e-03 : f32
    %45 = vector.broadcast %cst_15 : f32 to vector<8x128xf32>
    %46 = arith.cmpf ogt, %44, %45 : vector<8x128xf32>
    %cst_16 = arith.constant 1.000000e-03 : f32
    %47 = vector.broadcast %cst_16 : f32 to vector<8x128xf32>
    %48 = arith.subf %44, %47 : vector<8x128xf32>
    %49 = arith.mulf %43, %43 : vector<8x128xf32>
    %cst_17 = arith.constant 2.500000e+02 : f32
    %50 = vector.broadcast %cst_17 : f32 to vector<8x128xf32>
    %51 = arith.mulf %49, %50 : vector<8x128xf32>
    %52 = arith.select %46, %48, %51 : vector<8x128xi1>, vector<8x128xf32>
    %53 = arith.mulf %52, %43 : vector<8x128xf32>
    %cst_18 = arith.constant 0.000000e+00 : f32
    %54 = vector.broadcast %cst_18 : f32 to vector<8x128xf32>
    %55 = arith.cmpf ogt, %43, %54 : vector<8x128xf32>
    %cst_19 = arith.constant 0.899999976 : f32
    %cst_20 = arith.constant -1.000000e-01 : f32
    %56 = vector.broadcast %cst_19 : f32 to vector<8x128xf32>
    %57 = vector.broadcast %cst_20 : f32 to vector<8x128xf32>
    %58 = arith.select %55, %56, %57 : vector<8x128xi1>, vector<8x128xf32>
    %59 = arith.mulf %58, %53 : vector<8x128xf32>
    %60 = arith.addf %41, %59 : vector<8x128xf32>
    %c0_21 = arith.constant 0 : index
    %c0_22 = arith.constant 0 : index
    %61 = vector.load %arg5[%c0_21, %c0_22] : memref<8x128xf32, #tpu.memory_space<vmem>>, vector<8x128xf32>
    %62 = arith.addf %61, %60 : vector<8x128xf32>
    %c0_23 = arith.constant 0 : index
    %c0_24 = arith.constant 0 : index
    %63 = vector.load %arg5[%c0_23, %c0_24] : memref<8x128xf32, #tpu.memory_space<vmem>>, vector<8x128xf32>
    tpu.vector_store %arg5[%c0_23, %c0_24], %62 {strides = array<i32>} : memref<8x128xf32, #tpu.memory_space<vmem>>, vector<8x128xf32>,
    %c1_i32 = arith.constant 1 : i32
    %64 = arith.cmpi eq, %arg1, %c1_i32 : i32
    %65 = arith.extui %64 : i1 to i32
    %c0_i32_25 = arith.constant 0 : i32
    %66 = arith.cmpi ne, %65, %c0_i32_25 : i32
    scf.if %66 {
      %c0_26 = arith.constant 0 : index
      %c0_27 = arith.constant 0 : index
      %67 = vector.load %arg5[%c0_26, %c0_27] : memref<8x128xf32, #tpu.memory_space<vmem>>, vector<8x128xf32>
      %68 = vector.shape_cast %67 : vector<8x128xf32> to vector<1x8x128xf32>
      %cst_28 = arith.constant dense<0.000000e+00> : vector<1xf32>
      %69 = vector.multi_reduction <add>, %68, %cst_28 [1, 2] : vector<1x8x128xf32> to vector<1xf32>
      %70 = vector.shape_cast %69 : vector<1xf32> to vector<1x1x1xf32>
      %71 = vector.extract %70[0, 0, 0] : f32 from vector<1x1x1xf32>
      %72 = vector.broadcast %71 : f32 to vector<1x8x128xf32>
      %c0_29 = arith.constant 0 : index
      %c0_30 = arith.constant 0 : index
      %c0_31 = arith.constant 0 : index
      %73 = vector.load %arg4[%c0_29, %c0_30, %c0_31] : memref<1x8x128xf32, #tpu.memory_space<vmem>>, vector<1x8x128xf32>
      tpu.vector_store %arg4[%c0_29, %c0_30, %c0_31], %72 {strides = array<i32>} : memref<1x8x128xf32, #tpu.memory_space<vmem>>, vector<1x8x128xf32>,
    } else {
    }
    return
  }
  func.func @transform_0(%arg0: i32, %arg1: i32) -> (i32, i32) {
    %c2_i32 = arith.constant 2 : i32
    %0 = arith.muli %arg0, %c2_i32 : i32
    %1 = arith.addi %0, %arg1 : i32
    %c0_i32 = arith.constant 0 : i32
    %c0_i32_0 = arith.constant 0 : i32
    return %1, %c0_i32 : i32, i32
  }
  func.func @transform_1(%arg0: i32, %arg1: i32) -> (i32, i32) {
    %c2_i32 = arith.constant 2 : i32
    %0 = arith.muli %arg0, %c2_i32 : i32
    %1 = arith.addi %0, %arg1 : i32
    %c0_i32 = arith.constant 0 : i32
    %c0_i32_0 = arith.constant 0 : i32
    return %1, %c0_i32 : i32, i32
  }
  func.func @transform_2(%arg0: i32, %arg1: i32) -> (i32, i32, i32) {
    %c0_i32 = arith.constant 0 : i32
    %c0_i32_0 = arith.constant 0 : i32
    %c0_i32_1 = arith.constant 0 : i32
    return %arg0, %c0_i32, %c0_i32_0 : i32, i32, i32
  }
}

</mosaic_0001>

<llo_original>
// kernel: tpu_custom_call.1
$region0: #{tpu_custom_call.1}
  #allocation0 [shape = 'u32[]', space=smem, size = 0x4, offset = 0x4, fixed_abs, tag = 'smem constant byte address 0x4 - core index']
  #allocation1 [shape = 'u32[144,128]{1,0:T(1,128)}', space=vmem, size = 0x12000, scoped, tag = 'internal scratch']
  #allocation2 [shape = 'f32[8,128]{1,0:T(8,128)}', space=vmem, size = 0x1000, scoped, tag = 'scratch operand']
  %s0 = inlined_call_operand.hbm [shape: f32[32,384], index: 0, kind: input, shape index: {}]
  %s1 = inlined_call_operand.hbm [shape: f32[32,128], index: 1, kind: input, shape index: {}]
  %s2 = inlined_call_operand.hbm [shape: f32[2,8,128], index: 2, kind: output, shape index: {}]
  %s3 = sld [smem:[#allocation0]]
  $region57: #{tpu_custom_call.1} parent=0
    _
  %s5 = ssub.s32 1, %s3
  %s6 = scalar_select 0, %s5, %s3
  $region1: #{tpu_custom_call.1} parent=0
    #allocation3 [shape = 'u8[24576]{0}', space=vmem, size = 0x6000, scoped, tag = 'input window, operand 0']
    #allocation4 [shape = 's32[2]{0}', space=sflag, size = 0x8, scoped, tag = 'scoped memory for tpu_custom_call.1']
    #allocation5 [shape = 's32[2]{0}', space=sflag, size = 0x8, scoped, tag = 'scoped memory for tpu_custom_call.1']
    #allocation6 [shape = 'u8[8192]{0}', space=vmem, size = 0x2000, scoped, tag = 'input window, operand 1']
    #allocation7 [shape = 's32[2]{0}', space=sflag, size = 0x8, scoped, tag = 'scoped memory for tpu_custom_call.1']
    #allocation8 [shape = 'u8[8192]{0}', space=vmem, size = 0x2000, scoped, tag = 'output window, operand 0']
    %7 = vsyncpa [#allocation4], 0
    %s8 = scalar_lea.sflag [#allocation4], 1
    %9 = vsyncpa %s8, 0
    %10 = vsyncpa [#allocation7], 0
    %s11 = scalar_lea.sflag [#allocation7], 1
    %12 = vsyncpa %s11, 0
    %13 = vsyncpa [#allocation5], 0
    %s14 = scalar_lea.sflag [#allocation5], 1
    %15 = vsyncpa %s14, 0
    loop: start=0, step=1, limit=6
    $region2: #{tpu_custom_call.1} parent=1 // loop_pre_header
      _
    $region3: #{tpu_custom_call.1} parent=1 // loop_header
      %s17 = sphi 0, %s21
      %p18 = scmp.ge.s32.totalorder %s17, 6
      %s24 = sphi 0, %s36
      %s25 = sphi 0, %s32
      %s26 = sphi 0, %s24
      %s27 = sphi 0, %s25
      %s28 = sphi 0, %s26
      %s29 = sphi 0, %s27
      %s43 = sphi 0, %s45
      %s46 = sphi 0, %s43
      %s47 = sphi 0, %s46
      %s63 = sphi 0, %s47
      %s73 = sphi 0, %s75
      %s76 = sphi 0, %s73
      %s77 = sphi 0, %s76
      %s93 = sphi 0, %s77
      %s99 = sphi 0, %s101
      %s102 = sphi 0, %s99
      %s103 = sphi 0, %s102
      %s119 = sphi 0, %s103
    $region4: #{tpu_custom_call.1} parent=1 // loop_header_branch
      %20 = sbr.rel (%p18) target = $region8
    $region5: #{tpu_custom_call.1} parent=1 // loop_body
      %s22 = ssub.s32 %s17, 1
      %s23 = ssub.s32 %s17, 2
      %s30 = sadd.s32 1, %s25
      %p31 = scmp.ge.s32.totalorder %s30, 2
      %s32 = scalar_select %p31, 0, %s30
      %s33 = sadd.s32 1, %s24
      %s34 = scalar_select %p31, %s33, %s24
      %p35 = scmp.ge.s32.totalorder %s34, 2
      %s36 = scalar_select %p35, 0, %s34
      %s37 = smul.u32 %s24, 2
      %s38 = sadd.s32 %s37, %s25
      %s39 = smul.u32 %s36, 2
      %s40 = sadd.s32 %s39, %s32
      %s41 = ssub.s32 %s38, %s40
      %p42 = scmp.eq.s32.totalorder %s41, 0
      %s44 = sadd.s32 %s43, 1
      %s45 = scalar_select %p42, %s43, %s44
      %p48 = pneg %p42
      %p49 = scmp.eq.s32.totalorder %s17, 3
      %p50 = por %p48, %p49
      %p51 = scmp.ne.s32.totalorder %s43, %s46
      %p52 = scmp.eq.s32.totalorder %s17, 0
      %p53 = por %p51, %p52
      %p54 = scmp.ne.s32.totalorder %s43, %s46
      %p55 = scmp.eq.s32.totalorder %s22, 3
      %p56 = por %p54, %p55
      %p57 = scmp.ne.s32.totalorder %s46, %s47
      %p58 = scmp.eq.s32.totalorder %s22, 0
      %p59 = por %p57, %p58
      %p60 = scmp.ne.s32.totalorder %s46, %s47
      %p61 = scmp.eq.s32.totalorder %s23, 3
      %p62 = por %p60, %p61
      %p64 = scmp.ne.s32.totalorder %s47, %s63
      %p65 = scmp.eq.s32.totalorder %s23, 0
      %p66 = por %p64, %p65
      %s67 = smul.u32 %s24, 2
      %s68 = sadd.s32 %s67, %s25
      %s69 = smul.u32 %s36, 2
      %s70 = sadd.s32 %s69, %s32
      %s71 = ssub.s32 %s68, %s70
      %p72 = scmp.eq.s32.totalorder %s71, 0
      %s74 = sadd.s32 %s73, 1
      %s75 = scalar_select %p72, %s73, %s74
      %p78 = pneg %p72
      %p79 = scmp.eq.s32.totalorder %s17, 3
      %p80 = por %p78, %p79
      %p81 = scmp.ne.s32.totalorder %s73, %s76
      %p82 = scmp.eq.s32.totalorder %s17, 0
      %p83 = por %p81, %p82
      %p84 = scmp.ne.s32.totalorder %s73, %s76
      %p85 = scmp.eq.s32.totalorder %s22, 3
      %p86 = por %p84, %p85
      %p87 = scmp.ne.s32.totalorder %s76, %s77
      %p88 = scmp.eq.s32.totalorder %s22, 0
      %p89 = por %p87, %p88
      %p90 = scmp.ne.s32.totalorder %s76, %s77
      %p91 = scmp.eq.s32.totalorder %s23, 3
      %p92 = por %p90, %p91
      %p94 = scmp.ne.s32.totalorder %s77, %s93
      %p95 = scmp.eq.s32.totalorder %s23, 0
      %p96 = por %p94, %p95
      %s97 = ssub.s32 %s24, %s36
      %p98 = scmp.eq.s32.totalorder %s97, 0
      %s100 = sadd.s32 %s99, 1
      %s101 = scalar_select %p98, %s99, %s100
      %p104 = pneg %p98
      %p105 = scmp.eq.s32.totalorder %s17, 3
      %p106 = por %p104, %p105
      %p107 = scmp.ne.s32.totalorder %s99, %s102
      %p108 = scmp.eq.s32.totalorder %s17, 0
      %p109 = por %p107, %p108
      %p110 = scmp.ne.s32.totalorder %s99, %s102
      %p111 = scmp.eq.s32.totalorder %s22, 3
      %p112 = por %p110, %p111
      %p113 = scmp.ne.s32.totalorder %s102, %s103
      %p114 = scmp.eq.s32.totalorder %s22, 0
      %p115 = por %p113, %p114
      %p116 = scmp.ne.s32.totalorder %s102, %s103
      %p117 = scmp.eq.s32.totalorder %s23, 3
      %p118 = por %p116, %p117
      %p120 = scmp.ne.s32.totalorder %s103, %s119
      %p121 = scmp.eq.s32.totalorder %s23, 0
      %p122 = por %p120, %p121
      %p123 = scmp.le.s32.totalorder 1, %s17
      %p124 = scmp.lt.s32.totalorder %s17, 5
      %p125 = pnand %p123, %p124
      %p126 = pneg %p125
      // Predicated region
      $region9: #{tpu_custom_call.1} parent=5 // pred_check
        _
      $region10: #{tpu_custom_call.1} parent=5 // pred_check_branch
        %128 = sbr.rel (%p125) target = $region12
      $region11: #{tpu_custom_call.1} parent=5 // pred_region
        %s129 = ssub.s32 %s17, 1
      $region12: #{tpu_custom_call.1} parent=5 // pred_fallthru
        _
      %p130 = scmp.lt.s32.totalorder %s17, 4
      // Predicated region
      $region13: #{tpu_custom_call.1} parent=5 // pred_check
        %p131 = pneg %p130
      $region14: #{tpu_custom_call.1} parent=5 // pred_check_branch
        %133 = sbr.rel (%p131) target = $region16
      $region15: #{tpu_custom_call.1} parent=5 // pred_region
        // Predicated region
        $region17: #{tpu_custom_call.1} parent=15 // pred_check
          %p134 = pneg %p53
        $region18: #{tpu_custom_call.1} parent=15 // pred_check_branch
          %136 = sbr.rel (%p134) target = $region20
        $region19: #{tpu_custom_call.1} parent=15 // pred_region
          %s137 = sand.u32 %s43, 1
          %s138 = scalar_lea.sflag [#allocation4], %s137
          %s139 = sand.u32 %s43, 1
          %s140 = smul.addr %s139, 24
          %s141 = scalar_lea.vmem [#allocation3], %s140
          %s142 = smul.u32 %s24, 2
          %s143 = sadd.s32 %s142, %s25
          %s145 = ssub.s32 384, 384
          %146 = vsyncadd %s138, %s145
          %s147 = smul.addr %s143, 3
          %s148 = smul.addr %s147, 128
          %s149 = scalar_lea.hbm %s0, %s148
          %s151 = sshll.u32 %s141, 4
          %s152 = int_to_ptr.vmem [resolvable:$true] %s151
          %154 = dma.hbm_to_vmem [thread:$0]  %s149, 384, %s152, %s138
        $region20: #{tpu_custom_call.1} parent=15 // pred_fallthru
          _
        // Predicated region
        $region21: #{tpu_custom_call.1} parent=15 // pred_check
          %p155 = pneg %p83
        $region22: #{tpu_custom_call.1} parent=15 // pred_check_branch
          %157 = sbr.rel (%p155) target = $region24
        $region23: #{tpu_custom_call.1} parent=15 // pred_region
          %s158 = sand.u32 %s73, 1
          %s159 = scalar_lea.sflag [#allocation7], %s158
          %s160 = sand.u32 %s73, 1
          %s161 = smul.addr %s160, 8
          %s162 = scalar_lea.vmem [#allocation6], %s161
          %s163 = smul.u32 %s24, 2
          %s164 = sadd.s32 %s163, %s25
          %s166 = ssub.s32 128, 128
          %167 = vsyncadd %s159, %s166
          %s168 = smul.addr %s164, 128
          %s169 = scalar_lea.hbm %s1, %s168
          %s171 = sshll.u32 %s162, 4
          %s172 = int_to_ptr.vmem [resolvable:$true] %s171
          %174 = dma.hbm_to_vmem [thread:$0]  %s169, 128, %s172, %s159
        $region24: #{tpu_custom_call.1} parent=15 // pred_fallthru
          _
      $region16: #{tpu_custom_call.1} parent=5 // pred_fallthru
        _
      %p175 = scmp.le.s32.totalorder 1, %s17
      %p176 = scmp.lt.s32.totalorder %s17, 5
      %p177 = pnand %p175, %p176
      %p178 = pneg %p177
      // Predicated region
      $region25: #{tpu_custom_call.1} parent=5 // pred_check
        _
      $region26: #{tpu_custom_call.1} parent=5 // pred_check_branch
        %180 = sbr.rel (%p177) target = $region28
      $region27: #{tpu_custom_call.1} parent=5 // pred_region
        %s181 = ssub.s32 %s17, 1
        %s182 = sand.u32 %s46, 1
        %s183 = scalar_lea.sflag [#allocation4], %s182
        %s184 = sand.u32 %s46, 1
        %s185 = smul.addr %s184, 24
        %s186 = scalar_lea.vmem [#allocation3], %s185
        // Predicated region
        $region29: #{tpu_custom_call.1} parent=27 // pred_check
          %p187 = pneg %p59
        $region30: #{tpu_custom_call.1} parent=27 // pred_check_branch
          %189 = sbr.rel (%p187) target = $region32
        $region31: #{tpu_custom_call.1} parent=27 // pred_region
          %190 = dma.done %s183, 384
        $region32: #{tpu_custom_call.1} parent=27 // pred_fallthru
          _
        %s191 = sand.u32 %s76, 1
        %s192 = scalar_lea.sflag [#allocation7], %s191
        %s193 = sand.u32 %s76, 1
        %s194 = smul.addr %s193, 8
        %s195 = scalar_lea.vmem [#allocation6], %s194
        // Predicated region
        $region33: #{tpu_custom_call.1} parent=27 // pred_check
          %p196 = pneg %p89
        $region34: #{tpu_custom_call.1} parent=27 // pred_check_branch
          %198 = sbr.rel (%p196) target = $region36
        $region35: #{tpu_custom_call.1} parent=27 // pred_region
          %199 = dma.done %s192, 128
        $region36: #{tpu_custom_call.1} parent=27 // pred_fallthru
          _
        %s200 = sand.u32 %s46, 1
        %s201 = scalar_lea.sflag [#allocation4], %s200
        %s202 = sand.u32 %s46, 1
        %s203 = smul.addr %s202, 24
        %s204 = scalar_lea.vmem [#allocation3], %s203
        %p205 = pneg %p59
        %p206 = pneg %p56
        %s207 = sand.u32 %s76, 1
        %s208 = scalar_lea.sflag [#allocation7], %s207
        %s209 = sand.u32 %s76, 1
        %s210 = smul.addr %s209, 8
        %s211 = scalar_lea.vmem [#allocation6], %s210
        %p212 = pneg %p89
        %p213 = pneg %p86
        %p214 = pneg %p115
        %p215 = pneg %p112
        %s216 = sand.u32 %s102, 1
        %s217 = scalar_lea.sflag [#allocation5], %s216
        %s218 = sand.u32 %s102, 1
        %s219 = smul.addr %s218, 8
        %s220 = scalar_lea.vmem [#allocation8], %s219
        %s221 = smul.u32 %s26, 2
        %s222 = sadd.s32 %s221, %s27
        %s223 = smul.u32 %s26, 2
        %s224 = sadd.s32 %s223, %s27
        %p225 = scmp.eq.s32.totalorder %s27, 0
        // Predicated region
        $region37: #{tpu_custom_call.1} parent=27 // pred_check
          %p226 = pneg %p225
        $region38: #{tpu_custom_call.1} parent=27 // pred_check_branch
          %228 = sbr.rel (%p226) target = $region40
        $region39: #{tpu_custom_call.1} parent=27 // pred_region
          %229 = vst [vmem:[#allocation2] sm:$0xff] 0.0
        $region40: #{tpu_custom_call.1} parent=27 // pred_fallthru
          _
        %v230 = vld [vmem:[%s186] sm:$0xff]
        %v231 = vld [vmem:[%s186 + $0x8] sm:$0xff]
        %v232 = vld [vmem:[%s186 + $0x10] sm:$0xff]
        %v233 = vld [vmem:[%s195] sm:$0xff]
        %v234 = vsub.f32 %v233, %v230
        %v235 = vand.u32 2147483647, %v234
        %vm236 = vcmp.gt.f32.partialorder %v235, 0.002
        %v237 = vsub.f32 %v235, 0.001
        %v238 = vmul.f32 %v234, %v234
        %v239 = vmul.f32 %v238, 250.0
        %v240 = vsel %vm236, %v237, %v239
        %v241 = vmul.f32 %v240, %v234
        %vm242 = vcmp.gt.f32.partialorder %v234, 0.0
        %v243 = vsel %vm242, 0.1, -0.9
        %v244 = vmul.f32 %v243, %v241
        %v245 = vsub.f32 %v233, %v231
        %v246 = vand.u32 2147483647, %v245
        %vm247 = vcmp.gt.f32.partialorder %v246, 0.002
        %v248 = vsub.f32 %v246, 0.001
        %v249 = vmul.f32 %v245, %v245
        %v250 = vmul.f32 %v249, 250.0
        %v251 = vsel %vm247, %v248, %v250
        %v252 = vmul.f32 %v251, %v245
        %vm253 = vcmp.gt.f32.partialorder %v245, 0.0
        %v254 = vsel %vm253, 0.5, -0.5
        %v255 = vmul.f32 %v254, %v252
        %v256 = vadd.f32 %v244, %v255
        %v257 = vsub.f32 %v233, %v232
        %v258 = vand.u32 2147483647, %v257
        %vm259 = vcmp.gt.f32.partialorder %v258, 0.002
        %v260 = vsub.f32 %v258, 0.001
        %v261 = vmul.f32 %v257, %v257
        %v262 = vmul.f32 %v261, 250.0
        %v263 = vsel %vm259, %v260, %v262
        %v264 = vmul.f32 %v263, %v257
        %vm265 = vcmp.gt.f32.partialorder %v257, 0.0
        %v266 = vsel %vm265, 0.9, -0.1
        %v267 = vmul.f32 %v266, %v264
        %v268 = vadd.f32 %v256, %v267
        %v269 = vld [vmem:[#allocation2] sm:$0xff]
        %v270 = vadd.f32 %v269, %v268
        %271 = vst [vmem:[#allocation2] sm:$0xff] %v270
        %p272 = scmp.eq.s32.totalorder %s27, 1
        // Predicated region
        $region41: #{tpu_custom_call.1} parent=27 // pred_check
          %p273 = pneg %p272
        $region42: #{tpu_custom_call.1} parent=27 // pred_check_branch
          %275 = sbr.rel (%p273) target = $region44
        $region43: #{tpu_custom_call.1} parent=27 // pred_region
          %v276 = vld [vmem:[#allocation2] sm:$0xff]
          %277 = vadd.xlane.f32.xlu0 %v276
          %v278 = vpop.xlane.xlu0 %277
          %v279 = vrot.slane %v278, 4
          %v280 = vadd.f32 %v278, %v279
          %v281 = vrot.slane %v280, 2
          %v282 = vadd.f32 %v280, %v281
          %v283 = vrot.slane %v282, 1
          %v284 = vadd.f32 %v282, %v283
          %s285 = vtos %v284
          %v286 = vstv %s285
          %287 = vst [vmem:[%s220] sm:$0xff] %v286
        $region44: #{tpu_custom_call.1} parent=27 // pred_fallthru
          _
        %s288 = sand.u32 %s102, 1
        %s289 = scalar_lea.sflag [#allocation5], %s288
        %s290 = sand.u32 %s102, 1
        %s291 = smul.addr %s290, 8
        %s292 = scalar_lea.vmem [#allocation8], %s291
        // Predicated region
        $region45: #{tpu_custom_call.1} parent=27 // pred_check
          %p293 = pneg %p112
        $region46: #{tpu_custom_call.1} parent=27 // pred_check_branch
          %295 = sbr.rel (%p293) target = $region48
        $region47: #{tpu_custom_call.1} parent=27 // pred_region
          %s297 = ssub.s32 128, 128
          %298 = vsyncadd %s289, %s297
          %s299 = smul.addr %s26, 128
          %s300 = scalar_lea.hbm %s2, %s299
          %s302 = sshll.u32 %s292, 4
          %s303 = int_to_ptr.vmem [resolvable:$true] %s302
          %305 = dma.vmem_to_hbm [thread:$0]  %s303, 128, %s300, %s289
        $region48: #{tpu_custom_call.1} parent=27 // pred_fallthru
          _
      $region28: #{tpu_custom_call.1} parent=5 // pred_fallthru
        _
      %p306 = scmp.le.s32.totalorder 2, %s17
      // Predicated region
      $region49: #{tpu_custom_call.1} parent=5 // pred_check
        %p307 = pneg %p306
      $region50: #{tpu_custom_call.1} parent=5 // pred_check_branch
        %309 = sbr.rel (%p307) target = $region52
      $region51: #{tpu_custom_call.1} parent=5 // pred_region
        %s310 = ssub.s32 %s17, 2
        // Predicated region
        $region53: #{tpu_custom_call.1} parent=51 // pred_check
          %p311 = pneg %p118
        $region54: #{tpu_custom_call.1} parent=51 // pred_check_branch
          %313 = sbr.rel (%p311) target = $region56
        $region55: #{tpu_custom_call.1} parent=51 // pred_region
          %s314 = sand.u32 %s103, 1
          %s315 = scalar_lea.sflag [#allocation5], %s314
          %s316 = sand.u32 %s103, 1
          %s317 = smul.addr %s316, 8
          %s318 = scalar_lea.vmem [#allocation8], %s317
          %319 = dma.done %s315, 128
        $region56: #{tpu_custom_call.1} parent=51 // pred_fallthru
          _
      $region52: #{tpu_custom_call.1} parent=5 // pred_fallthru
        _
    $region6: #{tpu_custom_call.1} parent=1 // loop_footer
      %s21 = sadd.s32 1, %s17
    $region7: #{tpu_custom_call.1} parent=1 // loop_footer_branch
      %16 = sbr.rel target = $region3
    $region8: #{tpu_custom_call.1} parent=1 // loop_exit
      _
    %320 = vsyncpa [#allocation4], 1
    %s321 = scalar_lea.sflag [#allocation4], 1
    %322 = vsyncpa %s321, 1
    %323 = vsyncpa [#allocation7], 1
    %s324 = scalar_lea.sflag [#allocation7], 1
    %325 = vsyncpa %s324, 1
    %326 = vsyncpa [#allocation5], 1
    %s327 = scalar_lea.sflag [#allocation5], 1
    %328 = vsyncpa %s327, 1

</llo_original>
